<compile_context>
chip_gen: v7x
topology: tpu7x:2x2x1
jax: 0.10.0
libtpu: 0.0.40
codegen_flags: <defaults>
</compile_context>

<pallas_src>
import jax
import jax.numpy as jnp
from jax.experimental import pallas as pl
from jax.experimental.pallas import tpu as pltpu


def _dhead_kernel(b_ref, x_ref, w_ref, o_ref):
    """One grid step: 1x1-conv over one (C, THW) spatial tile of one image.

    b_ref: (1,)     f32  SMEM  -- conv bias (scalar prefetch)
    x_ref: (C, THW)      VMEM  -- NCHW-native activation tile (channel-major)
    w_ref: (1, C)        VMEM  -- 1x1-conv weight, lane-major
    o_ref: (1, THW)      VMEM  -- lane-dense output tile
    """
    acc = jnp.dot(w_ref[...], x_ref[...], preferred_element_type=jnp.float32)
    o_ref[...] = (acc + b_ref[0]).astype(o_ref.dtype)


def _dhead_conv_pallas(x_ncm, w_row, bias_f32, *, target_block_bytes=16 << 20):
    """x_ncm: (N, C, M) NCHW-native activations (M = H*W), w_row: (1, C),
    bias_f32: (1,) f32  ->  conv output (N, 1, M) in x dtype."""
    N, C, M = x_ncm.shape
    itemsize = jnp.dtype(x_ncm.dtype).itemsize

    # Lane-dense spatial tile sized so each activation block is ~target_block_bytes
    # (scales with dtype: bf16 gets 2x the columns of f32 for the same DMA size).
    t_hw = max(128, (target_block_bytes // (C * itemsize)) // 128 * 128)
    if t_hw >= M:
        t_hw = M  # single block covers the whole spatial extent (no ragged block)

    grid = (N, pl.cdiv(M, t_hw))

    # Size scoped VMEM to the real footprint (double-buffered blocks + headroom)
    # rather than 64 MiB (the entire physical VMEM of a v7x TensorCore).
    x_blk = C * t_hw * itemsize
    o_blk = 8 * t_hw * itemsize  # sublane-padded output block
    w_blk = 8 * C * itemsize
    vmem_limit = int(min(2 * (x_blk + o_blk + w_blk) + (8 << 20), 48 << 20))

    return pl.pallas_call(
        _dhead_kernel,
        out_shape=jax.ShapeDtypeStruct((N, 1, M), x_ncm.dtype),
        grid_spec=pltpu.PrefetchScalarGridSpec(
            num_scalar_prefetch=1,  # bias -> SMEM
            grid=grid,
            in_specs=[
                # Activations: per-image channel-major tile, straight from NCHW.
                pl.BlockSpec((None, C, t_hw), lambda n, j, b: (n, 0, j)),
                # Whole weight vector, lane-major.
                pl.BlockSpec((1, C), lambda n, j, b: (0, 0)),
            ],
            out_specs=pl.BlockSpec((None, 1, t_hw), lambda n, j, b: (n, 0, j)),
        ),
        compiler_params=pltpu.CompilerParams(
            # Independent (image, spatial-tile) blocks.
            # TODO(synk): on v7x verify the 'parallel' axes shard across both
            # TensorCores; switch to pltpu.CORE_PARALLEL only if one TC's DMA
            # stream cannot saturate chip HBM.
            dimension_semantics=("parallel", "parallel"),
            vmem_limit_bytes=vmem_limit,
        ),
    )(bias_f32, x_ncm, w_row)


def dhead_forward(x_nchw, weight, bias):
    """Equivalent of DHead.forward: Conv2d(1024, 1, 1) then squeeze(-1).squeeze(-1).

    x_nchw : (N, 1024, H, W)
    weight : (1, 1024, 1, 1)
    bias   : (1,)
    """
    N, C, H, W = x_nchw.shape
    M = H * W

    # Keep activations in their native dtype; match weight to it (the dot still
    # accumulates in f32).  Precision note: for bf16 activations the f32 conv
    # weight is downcast to bf16 before the MXU -- acceptable for a
    # discriminator head.
    w_row = weight.reshape(1, C).astype(x_nchw.dtype)  # (1, C), lane-major
    b_vec = bias.reshape(1).astype(jnp.float32)        # SMEM scalar

    if M >= 128:
        # Pallas path, directly on the NCHW layout (no transpose / pad / extra
        # HBM pass); output comes back already in NCHW.
        x_ncm = x_nchw.reshape(N, C, M)                   # pure reshape, no copy
        conv = _dhead_conv_pallas(x_ncm, w_row, b_vec)    # (N, 1, M)
        conv = conv.reshape(N, 1, H, W)
    else:
        # Tiny spatial extent (the production DHead case: H=W=1).  The whole op
        # reads a few KB; pallas_call launch overhead dominates and a lane
        # width < 128 would force masked partial stores, so XLA's fused dot is
        # strictly faster here.
        # TODO(synk): a row-tiled (M, C) @ (C, 1) Pallas variant could cover a
        # hypothetical large-N, H=W=1 input without this fallback.
        conv = (
            jnp.einsum(
                "ncm,c->nm",
                x_nchw.reshape(N, C, M).astype(jnp.float32),
                w_row.reshape(C).astype(jnp.float32),
            )
            + b_vec
        ).astype(x_nchw.dtype).reshape(N, 1, H, W)

    # torch .squeeze(dim=-1).squeeze(dim=-1): only removes size-1 dims.
    out = conv
    if out.shape[-1] == 1:
        out = jnp.squeeze(out, axis=-1)
    if out.shape[-1] == 1:
        out = jnp.squeeze(out, axis=-1)
    return out


if __name__ == "__main__":
    key = jax.random.PRNGKey(0)
    k_x, k_w, k_b, k_x2 = jax.random.split(key, 4)

    C = 1024  # hard-coded by DHead's Conv2d(1024, 1, 1)

    # Conv2d(1024, 1, 1) parameters (deterministic synthetic values).
    weight = jax.random.normal(k_w, (1, C, 1, 1), dtype=jnp.float32) * 0.02
    bias = jax.random.normal(k_b, (1,), dtype=jnp.float32) * 0.02

    # --- Pallas path: modest spatial feature map (exercises the kernel) ---
    N, H, W = 2, 16, 16
    x = jax.random.normal(k_x, (N, C, H, W), dtype=jnp.float32)
    out = jax.block_until_ready(dhead_forward(x, weight, bias))

    ref = jnp.einsum("nchw,oc->nohw", x, weight.reshape(1, C)) + bias.reshape(1, 1, 1, 1)
    # W=16 != 1 -> torch squeeze removes nothing; shape stays (N, 1, H, W).
    assert out.shape == (N, 1, H, W), out.shape
    assert jnp.allclose(out, ref, atol=1e-3, rtol=1e-3)

    # --- Production DHead shape (H=W=1): small-problem XLA fallback ---
    x_small = jax.random.normal(k_x2, (N, C, 1, 1), dtype=jnp.float32)
    out_small = jax.block_until_ready(dhead_forward(x_small, weight, bias))
    ref_small = (
        jnp.einsum("nchw,oc->nohw", x_small, weight.reshape(1, C))
        + bias.reshape(1, 1, 1, 1)
    )[:, :, 0, 0]
    assert out_small.shape == (N, 1), out_small.shape
    assert jnp.allclose(out_small, ref_small, atol=1e-3, rtol=1e-3)

    print("KERNEL_OK")
</pallas_src>

<mosaic_0001>
module attributes {stable_mosaic.version = 11 : i64} {
  func.func @_dhead_kernel(%arg0: i32, %arg1: i32, %arg2: memref<1xf32, #tpu.memory_space<smem>>, %arg3: memref<1x1024x256xf32, #tpu.memory_space<vmem>>, %arg4: memref<1x1024xf32, #tpu.memory_space<vmem>>, %arg5: memref<1x1x256xf32, #tpu.memory_space<vmem>>) attributes {dimension_semantics = [#tpu.dimension_semantics<parallel>, #tpu.dimension_semantics<parallel>], iteration_bounds = array<i64: 2, 1>, scalar_prefetch = 1 : i64, scratch_operands = 0 : i64, tpu.core_type = #tpu.core_type<tc>, window_params = [{transform_indices = @transform_0, window_bounds = array<i64: 1, 1024, 256>}, {pipeline_mode = #tpu.pipeline_mode<synchronous>, transform_indices = @transform_1, window_bounds = array<i64: 1, 1024>}, {transform_indices = @transform_2, window_bounds = array<i64: 1, 1, 256>}]} {
    %c0 = arith.constant 0 : index
    %c0_0 = arith.constant 0 : index
    %0 = vector.load %arg4[%c0, %c0_0] : memref<1x1024xf32, #tpu.memory_space<vmem>>, vector<1x1024xf32>
    %c0_1 = arith.constant 0 : index
    %c0_2 = arith.constant 0 : index
    %c0_3 = arith.constant 0 : index
    %1 = vector.load %arg3[%c0_1, %c0_2, %c0_3] : memref<1x1024x256xf32, #tpu.memory_space<vmem>>, vector<1x1024x256xf32>
    %2 = vector.shape_cast %1 : vector<1x1024x256xf32> to vector<1024x256xf32>
    %cst = arith.constant dense<0.000000e+00> : vector<1x256xf32>
    %3 = tpu.matmul %0, %2, %cst {dimension_numbers = #tpu.dot_dimension_numbers<[1], [0], [0], [1], [0, 0, 1, 1], [], []>} : vector<1x1024xf32>, vector<1024x256xf32>, vector<1x256xf32> -> vector<1x256xf32>
    %c0_4 = arith.constant 0 : index
    %4 = memref.load %arg2[%c0_4] : memref<1xf32, #tpu.memory_space<smem>>
    %5 = vector.broadcast %4 : f32 to vector<1x256xf32>
    %6 = arith.addf %3, %5 : vector<1x256xf32>
    %c0_5 = arith.constant 0 : index
    %c0_6 = arith.constant 0 : index
    %c0_7 = arith.constant 0 : index
    %7 = vector.load %arg5[%c0_5, %c0_6, %c0_7] : memref<1x1x256xf32, #tpu.memory_space<vmem>>, vector<1x1x256xf32>
    %8 = vector.shape_cast %7 : vector<1x1x256xf32> to vector<1x256xf32>
    %9 = vector.shape_cast %6 : vector<1x256xf32> to vector<1x1x256xf32>
    tpu.vector_store %arg5[%c0_5, %c0_6, %c0_7], %9 {strides = array<i32>} : memref<1x1x256xf32, #tpu.memory_space<vmem>>, vector<1x1x256xf32>,
    return
  }
  func.func @transform_0(%arg0: i32, %arg1: i32, %arg2: memref<1xf32, #tpu.memory_space<smem>>) -> (i32, i32, i32) {
    %c0_i32 = arith.constant 0 : i32
    %c0_i32_0 = arith.constant 0 : i32
    return %arg0, %c0_i32, %arg1 : i32, i32, i32
  }
  func.func @transform_1(%arg0: i32, %arg1: i32, %arg2: memref<1xf32, #tpu.memory_space<smem>>) -> (i32, i32) {
    %c0_i32 = arith.constant 0 : i32
    %c0_i32_0 = arith.constant 0 : i32
    %c0_i32_1 = arith.constant 0 : i32
    return %c0_i32, %c0_i32_0 : i32, i32
  }
  func.func @transform_2(%arg0: i32, %arg1: i32, %arg2: memref<1xf32, #tpu.memory_space<smem>>) -> (i32, i32, i32) {
    %c0_i32 = arith.constant 0 : i32
    %c0_i32_0 = arith.constant 0 : i32
    return %arg0, %c0_i32, %arg1 : i32, i32, i32
  }
}

</mosaic_0001>

<llo_original>
// kernel: tpu_custom_call.1
$region0: #{tpu_custom_call.1}
  #allocation0 [shape = 'u32[]', space=smem, size = 0x4, offset = 0x4, fixed_abs, tag = 'smem constant byte address 0x4 - core index']
  #allocation1 [shape = 'u32[144,128]{1,0:T(1,128)}', space=vmem, size = 0x12000, scoped, tag = 'internal scratch']
  #allocation2 [shape = 's32[1]{0}', space=sflag, size = 0x4, scoped, tag = 'scoped memory for tpu_custom_call.1']
  #allocation3 [shape = 'f32[1]{0:T(128)S(6)}', space=smem, size = 0x200, scoped, tag = 'prefetched SMEM operand 0']
  %s0 = inlined_call_operand.<no memory space> [shape: f32[1], index: 0, kind: input, shape index: {}]
  %s1 = inlined_call_operand.hbm [shape: f32[2,1024,256], index: 1, kind: input, shape index: {}]
  %s2 = inlined_call_operand.hbm [shape: f32[1,1024], index: 2, kind: input, shape index: {}]
  %s3 = inlined_call_operand.hbm [shape: f32[2,1,256], index: 3, kind: output, shape index: {}]
  %s4 = sld [smem:[#allocation0]]
  $region49: #{tpu_custom_call.1} parent=0
    _
  %s6 = ssub.s32 1, %s4
  %s7 = scalar_select 0, %s6, %s4
  %8 = sst [smem:[#allocation3]] %s0
  $region1: #{tpu_custom_call.1} parent=0
    #allocation4 [shape = 'u8[2097152]{0}', space=vmem, size = 0x200000, scoped, tag = 'input window, operand 1']
    #allocation5 [shape = 's32[2]{0}', space=sflag, size = 0x8, scoped, tag = 'scoped memory for tpu_custom_call.1']
    #allocation6 [shape = 's32[2]{0}', space=sflag, size = 0x8, scoped, tag = 'scoped memory for tpu_custom_call.1']
    #allocation7 [shape = 'u8[4096]{0}', space=vmem, size = 0x1000, scoped, tag = 'input window, operand 2, single buffered']
    #allocation8 [shape = 's32[1]{0}', space=sflag, size = 0x4, scoped, tag = 'scoped memory for tpu_custom_call.1']
    #allocation9 [shape = 'u8[2048]{0}', space=vmem, size = 0x800, scoped, tag = 'output window, operand 0']
    %9 = vsyncpa [#allocation5], 0
    %s10 = scalar_lea.sflag [#allocation5], 1
    %11 = vsyncpa %s10, 0
    %12 = vsyncpa [#allocation8], 0
    %13 = vsyncpa [#allocation6], 0
    %s14 = scalar_lea.sflag [#allocation6], 1
    %15 = vsyncpa %s14, 0
    loop: start=0, step=1, limit=4
    $region2: #{tpu_custom_call.1} parent=1 // loop_pre_header
      _
    $region3: #{tpu_custom_call.1} parent=1 // loop_header
      %s17 = sphi 0, %s21
      %p18 = scmp.ge.s32.totalorder %s17, 4
      %s24 = sphi 0, %s36
      %s25 = sphi 0, %s32
      %s26 = sphi 0, %s24
      %s27 = sphi 0, %s25
      %s28 = sphi 0, %s26
      %s29 = sphi 0, %s27
      %s41 = sphi 0, %s43
      %s44 = sphi 0, %s41
      %s45 = sphi 0, %s44
      %s61 = sphi 0, %s45
      %s65 = sphi 0, %s65
      %s67 = sphi 0, %s65
      %s68 = sphi 0, %s67
      %s82 = sphi 0, %s68
      %s90 = sphi 0, %s92
      %s93 = sphi 0, %s90
      %s94 = sphi 0, %s93
      %s110 = sphi 0, %s94
    $region4: #{tpu_custom_call.1} parent=1 // loop_header_branch
      %20 = sbr.rel (%p18) target = $region8
    $region5: #{tpu_custom_call.1} parent=1 // loop_body
      %s22 = ssub.s32 %s17, 1
      %s23 = ssub.s32 %s17, 2
      %s30 = sadd.s32 1, %s25
      %p31 = scmp.ge.s32.totalorder %s30, 1
      %s32 = scalar_select %p31, 0, %s30
      %s33 = sadd.s32 1, %s24
      %s34 = scalar_select %p31, %s33, %s24
      %p35 = scmp.ge.s32.totalorder %s34, 2
      %s36 = scalar_select %p35, 0, %s34
      %s37 = ssub.s32 %s24, %s36
      %s38 = ssub.s32 %s25, %s32
      %s39 = sor.u32 %s37, %s38
      %p40 = scmp.eq.s32.totalorder %s39, 0
      %s42 = sadd.s32 %s41, 1
      %s43 = scalar_select %p40, %s41, %s42
      %p46 = pneg %p40
      %p47 = scmp.eq.s32.totalorder %s17, 1
      %p48 = por %p46, %p47
      %p49 = scmp.ne.s32.totalorder %s41, %s44
      %p50 = scmp.eq.s32.totalorder %s17, 0
      %p51 = por %p49, %p50
      %p52 = scmp.ne.s32.totalorder %s41, %s44
      %p53 = scmp.eq.s32.totalorder %s22, 1
      %p54 = por %p52, %p53
      %p55 = scmp.ne.s32.totalorder %s44, %s45
      %p56 = scmp.eq.s32.totalorder %s22, 0
      %p57 = por %p55, %p56
      %p58 = scmp.ne.s32.totalorder %s44, %s45
      %p59 = scmp.eq.s32.totalorder %s23, 1
      %p60 = por %p58, %p59
      %p62 = scmp.ne.s32.totalorder %s45, %s61
      %p63 = scmp.eq.s32.totalorder %s23, 0
      %p64 = por %p62, %p63
      %s66 = sadd.s32 %s65, 1
      %p69 = scmp.eq.s32.totalorder %s17, 1
      %p70 = scmp.ne.s32.totalorder %s65, %s67
      %p71 = scmp.eq.s32.totalorder %s17, 0
      %p72 = por %p70, %p71
      %p73 = scmp.ne.s32.totalorder %s65, %s67
      %p74 = scmp.eq.s32.totalorder %s22, 1
      %p75 = por %p73, %p74
      %p76 = scmp.ne.s32.totalorder %s67, %s68
      %p77 = scmp.eq.s32.totalorder %s22, 0
      %p78 = por %p76, %p77
      %p79 = scmp.ne.s32.totalorder %s67, %s68
      %p80 = scmp.eq.s32.totalorder %s23, 1
      %p81 = por %p79, %p80
      %p83 = scmp.ne.s32.totalorder %s68, %s82
      %p84 = scmp.eq.s32.totalorder %s23, 0
      %p85 = por %p83, %p84
      %s86 = ssub.s32 %s24, %s36
      %s87 = ssub.s32 %s25, %s32
      %s88 = sor.u32 %s86, %s87
      %p89 = scmp.eq.s32.totalorder %s88, 0
      %s91 = sadd.s32 %s90, 1
      %s92 = scalar_select %p89, %s90, %s91
      %p95 = pneg %p89
      %p96 = scmp.eq.s32.totalorder %s17, 1
      %p97 = por %p95, %p96
      %p98 = scmp.ne.s32.totalorder %s90, %s93
      %p99 = scmp.eq.s32.totalorder %s17, 0
      %p100 = por %p98, %p99
      %p101 = scmp.ne.s32.totalorder %s90, %s93
      %p102 = scmp.eq.s32.totalorder %s22, 1
      %p103 = por %p101, %p102
      %p104 = scmp.ne.s32.totalorder %s93, %s94
      %p105 = scmp.eq.s32.totalorder %s22, 0
      %p106 = por %p104, %p105
      %p107 = scmp.ne.s32.totalorder %s93, %s94
      %p108 = scmp.eq.s32.totalorder %s23, 1
      %p109 = por %p107, %p108
      %p111 = scmp.ne.s32.totalorder %s94, %s110
      %p112 = scmp.eq.s32.totalorder %s23, 0
      %p113 = por %p111, %p112
      %p114 = scmp.le.s32.totalorder 1, %s17
      %p115 = scmp.lt.s32.totalorder %s17, 3
      %p116 = pnand %p114, %p115
      %p117 = pneg %p116
      // Predicated region
      $region9: #{tpu_custom_call.1} parent=5 // pred_check
        _
      $region10: #{tpu_custom_call.1} parent=5 // pred_check_branch
        %119 = sbr.rel (%p116) target = $region12
      $region11: #{tpu_custom_call.1} parent=5 // pred_region
        %s120 = ssub.s32 %s17, 1
        // Predicated region
        $region13: #{tpu_custom_call.1} parent=11 // pred_check
          %p121 = pneg %p78
        $region14: #{tpu_custom_call.1} parent=11 // pred_check_branch
          %123 = sbr.rel (%p121) target = $region16
        $region15: #{tpu_custom_call.1} parent=11 // pred_region
          %s125 = ssub.s32 128, 128
          %126 = vsyncadd [#allocation8], %s125
          %s128 = sshll.u32 [#allocation7], 4
          %s129 = int_to_ptr.vmem [resolvable:$true] %s128
          %131 = dma.hbm_to_vmem [thread:$0]  %s2, 128, %s129, [#allocation8]
        $region16: #{tpu_custom_call.1} parent=11 // pred_fallthru
          _
      $region12: #{tpu_custom_call.1} parent=5 // pred_fallthru
        _
      %p132 = scmp.lt.s32.totalorder %s17, 2
      // Predicated region
      $region17: #{tpu_custom_call.1} parent=5 // pred_check
        %p133 = pneg %p132
      $region18: #{tpu_custom_call.1} parent=5 // pred_check_branch
        %135 = sbr.rel (%p133) target = $region20
      $region19: #{tpu_custom_call.1} parent=5 // pred_region
        // Predicated region
        $region21: #{tpu_custom_call.1} parent=19 // pred_check
          %p136 = pneg %p51
        $region22: #{tpu_custom_call.1} parent=19 // pred_check_branch
          %138 = sbr.rel (%p136) target = $region24
        $region23: #{tpu_custom_call.1} parent=19 // pred_region
          %s139 = sand.u32 %s41, 1
          %s140 = scalar_lea.sflag [#allocation5], %s139
          %s141 = sand.u32 %s41, 1
          %s142 = smul.addr %s141, 2048
          %s143 = scalar_lea.vmem [#allocation4], %s142
          %s144 = smul.u32 2, %s25
          %s146 = ssub.s32 32768, 32768
          %147 = vsyncadd %s140, %s146
          %s148 = smul.addr %s24, 256
          %s149 = sadd.s32 %s144, %s148
          %s150 = smul.addr %s149, 128
          %s151 = scalar_lea.hbm %s1, %s150
          %s152 = sshll.u32 %s143, 4
          %s153 = int_to_ptr.vmem [resolvable:$true] %s152
          %158 = dma.hbm_to_vmem [thread:$0]  %s151, 32768, %s153, %s140, 256, 256, 16
        $region24: #{tpu_custom_call.1} parent=19 // pred_fallthru
          _
      $region20: #{tpu_custom_call.1} parent=5 // pred_fallthru
        _
      %p159 = scmp.le.s32.totalorder 1, %s17
      %p160 = scmp.lt.s32.totalorder %s17, 3
      %p161 = pnand %p159, %p160
      %p162 = pneg %p161
      // Predicated region
      $region25: #{tpu_custom_call.1} parent=5 // pred_check
        _
      $region26: #{tpu_custom_call.1} parent=5 // pred_check_branch
        %164 = sbr.rel (%p161) target = $region28
      $region27: #{tpu_custom_call.1} parent=5 // pred_region
        %s165 = ssub.s32 %s17, 1
        %s166 = sand.u32 %s44, 1
        %s167 = scalar_lea.sflag [#allocation5], %s166
        %s168 = sand.u32 %s44, 1
        %s169 = smul.addr %s168, 2048
        %s170 = scalar_lea.vmem [#allocation4], %s169
        // Predicated region
        $region29: #{tpu_custom_call.1} parent=27 // pred_check
          %p171 = pneg %p57
        $region30: #{tpu_custom_call.1} parent=27 // pred_check_branch
          %173 = sbr.rel (%p171) target = $region32
        $region31: #{tpu_custom_call.1} parent=27 // pred_region
          %174 = dma.done %s167, 32768
        $region32: #{tpu_custom_call.1} parent=27 // pred_fallthru
          _
        // Predicated region
        $region33: #{tpu_custom_call.1} parent=27 // pred_check
          %p175 = pneg %p78
        $region34: #{tpu_custom_call.1} parent=27 // pred_check_branch
          %177 = sbr.rel (%p175) target = $region36
        $region35: #{tpu_custom_call.1} parent=27 // pred_region
          %178 = dma.done [#allocation8], 128
        $region36: #{tpu_custom_call.1} parent=27 // pred_fallthru
          _
        %s179 = sand.u32 %s44, 1
        %s180 = scalar_lea.sflag [#allocation5], %s179
        %s181 = sand.u32 %s44, 1
        %s182 = smul.addr %s181, 2048
        %s183 = scalar_lea.vmem [#allocation4], %s182
        %p184 = pneg %p57
        %p185 = pneg %p54
        %p186 = pneg %p78
        %p187 = pneg %p75
        %p188 = pneg %p106
        %p189 = pneg %p103
        %s190 = sand.u32 %s93, 1
        %s191 = scalar_lea.sflag [#allocation6], %s190
        %s192 = sand.u32 %s93, 1
        %s193 = smul.addr %s192, 2
        %s194 = scalar_lea.vmem [#allocation9], %s193
        %s195 = smul.u32 2, %s27
        %s196 = smul.u32 2, %s27
        %v197 = vld [vmem:[#allocation7] sm:$0xff]
        %v198 = vld [vmem:[%s170] sm:$0xff]
        %v199 = vld [vmem:[%s170 + $0x8] sm:$0xff]
        %v200 = vld [vmem:[%s170 + $0x10] sm:$0xff]
        %v201 = vld [vmem:[%s170 + $0x18] sm:$0xff]
        %v202 = vld [vmem:[%s170 + $0x20] sm:$0xff]
        %v203 = vld [vmem:[%s170 + $0x28] sm:$0xff]
        %v204 = vld [vmem:[%s170 + $0x30] sm:$0xff]
        %v205 = vld [vmem:[%s170 + $0x38] sm:$0xff]
        %v206 = vld [vmem:[%s170 + $0x40] sm:$0xff]
        %v207 = vld [vmem:[%s170 + $0x48] sm:$0xff]
        %v208 = vld [vmem:[%s170 + $0x50] sm:$0xff]
        %v209 = vld [vmem:[%s170 + $0x58] sm:$0xff]
        %v210 = vld [vmem:[%s170 + $0x60] sm:$0xff]
        %v211 = vld [vmem:[%s170 + $0x68] sm:$0xff]
        %v212 = vld [vmem:[%s170 + $0x70] sm:$0xff]
        %v213 = vld [vmem:[%s170 + $0x78] sm:$0xff]
        %v214 = vld [vmem:[%s170 + $0x80] sm:$0xff]
        %v215 = vld [vmem:[%s170 + $0x88] sm:$0xff]
        %v216 = vld [vmem:[%s170 + $0x90] sm:$0xff]
        %v217 = vld [vmem:[%s170 + $0x98] sm:$0xff]
        %v218 = vld [vmem:[%s170 + $0xa0] sm:$0xff]
        %v219 = vld [vmem:[%s170 + $0xa8] sm:$0xff]
        %v220 = vld [vmem:[%s170 + $0xb0] sm:$0xff]
        %v221 = vld [vmem:[%s170 + $0xb8] sm:$0xff]
        %v222 = vld [vmem:[%s170 + $0xc0] sm:$0xff]
        %v223 = vld [vmem:[%s170 + $0xc8] sm:$0xff]
        %v224 = vld [vmem:[%s170 + $0xd0] sm:$0xff]
        %v225 = vld [vmem:[%s170 + $0xd8] sm:$0xff]
        %v226 = vld [vmem:[%s170 + $0xe0] sm:$0xff]
        %v227 = vld [vmem:[%s170 + $0xe8] sm:$0xff]
        %v228 = vld [vmem:[%s170 + $0xf0] sm:$0xff]
        %v229 = vld [vmem:[%s170 + $0xf8] sm:$0xff]
        %v230 = vld [vmem:[%s170 + $0x100] sm:$0xff]
        %v231 = vld [vmem:[%s170 + $0x108] sm:$0xff]
        %v232 = vld [vmem:[%s170 + $0x110] sm:$0xff]
        %v233 = vld [vmem:[%s170 + $0x118] sm:$0xff]
        %v234 = vld [vmem:[%s170 + $0x120] sm:$0xff]
        %v235 = vld [vmem:[%s170 + $0x128] sm:$0xff]
        %v236 = vld [vmem:[%s170 + $0x130] sm:$0xff]
        %v237 = vld [vmem:[%s170 + $0x138] sm:$0xff]
        %v238 = vld [vmem:[%s170 + $0x140] sm:$0xff]
        %v239 = vld [vmem:[%s170 + $0x148] sm:$0xff]
        %v240 = vld [vmem:[%s170 + $0x150] sm:$0xff]
        %v241 = vld [vmem:[%s170 + $0x158] sm:$0xff]
        %v242 = vld [vmem:[%s170 + $0x160] sm:$0xff]
        %v243 = vld [vmem:[%s170 + $0x168] sm:$0xff]
        %v244 = vld [vmem:[%s170 + $0x170] sm:$0xff]
        %v245 = vld [vmem:[%s170 + $0x178] sm:$0xff]
        %v246 = vld [vmem:[%s170 + $0x180] sm:$0xff]
        %v247 = vld [vmem:[%s170 + $0x188] sm:$0xff]
        %v248 = vld [vmem:[%s170 + $0x190] sm:$0xff]
        %v249 = vld [vmem:[%s170 + $0x198] sm:$0xff]
        %v250 = vld [vmem:[%s170 + $0x1a0] sm:$0xff]
        %v251 = vld [vmem:[%s170 + $0x1a8] sm:$0xff]
        %v252 = vld [vmem:[%s170 + $0x1b0] sm:$0xff]
        %v253 = vld [vmem:[%s170 + $0x1b8] sm:$0xff]
        %v254 = vld [vmem:[%s170 + $0x1c0] sm:$0xff]
        %v255 = vld [vmem:[%s170 + $0x1c8] sm:$0xff]
        %v256 = vld [vmem:[%s170 + $0x1d0] sm:$0xff]
        %v257 = vld [vmem:[%s170 + $0x1d8] sm:$0xff]
        %v258 = vld [vmem:[%s170 + $0x1e0] sm:$0xff]
        %v259 = vld [vmem:[%s170 + $0x1e8] sm:$0xff]
        %v260 = vld [vmem:[%s170 + $0x1f0] sm:$0xff]
        %v261 = vld [vmem:[%s170 + $0x1f8] sm:$0xff]
        %v262 = vld [vmem:[%s170 + $0x200] sm:$0xff]
        %v263 = vld [vmem:[%s170 + $0x208] sm:$0xff]
        %v264 = vld [vmem:[%s170 + $0x210] sm:$0xff]
        %v265 = vld [vmem:[%s170 + $0x218] sm:$0xff]
        %v266 = vld [vmem:[%s170 + $0x220] sm:$0xff]
        %v267 = vld [vmem:[%s170 + $0x228] sm:$0xff]
        %v268 = vld [vmem:[%s170 + $0x230] sm:$0xff]
        %v269 = vld [vmem:[%s170 + $0x238] sm:$0xff]
        %v270 = vld [vmem:[%s170 + $0x240] sm:$0xff]
        %v271 = vld [vmem:[%s170 + $0x248] sm:$0xff]
        %v272 = vld [vmem:[%s170 + $0x250] sm:$0xff]
        %v273 = vld [vmem:[%s170 + $0x258] sm:$0xff]
        %v274 = vld [vmem:[%s170 + $0x260] sm:$0xff]
        %v275 = vld [vmem:[%s170 + $0x268] sm:$0xff]
        %v276 = vld [vmem:[%s170 + $0x270] sm:$0xff]
        %v277 = vld [vmem:[%s170 + $0x278] sm:$0xff]
        %v278 = vld [vmem:[%s170 + $0x280] sm:$0xff]
        %v279 = vld [vmem:[%s170 + $0x288] sm:$0xff]
        %v280 = vld [vmem:[%s170 + $0x290] sm:$0xff]
        %v281 = vld [vmem:[%s170 + $0x298] sm:$0xff]
        %v282 = vld [vmem:[%s170 + $0x2a0] sm:$0xff]
        %v283 = vld [vmem:[%s170 + $0x2a8] sm:$0xff]
        %v284 = vld [vmem:[%s170 + $0x2b0] sm:$0xff]
        %v285 = vld [vmem:[%s170 + $0x2b8] sm:$0xff]
        %v286 = vld [vmem:[%s170 + $0x2c0] sm:$0xff]
        %v287 = vld [vmem:[%s170 + $0x2c8] sm:$0xff]
        %v288 = vld [vmem:[%s170 + $0x2d0] sm:$0xff]
        %v289 = vld [vmem:[%s170 + $0x2d8] sm:$0xff]
        %v290 = vld [vmem:[%s170 + $0x2e0] sm:$0xff]
        %v291 = vld [vmem:[%s170 + $0x2e8] sm:$0xff]
        %v292 = vld [vmem:[%s170 + $0x2f0] sm:$0xff]
        %v293 = vld [vmem:[%s170 + $0x2f8] sm:$0xff]
        %v294 = vld [vmem:[%s170 + $0x300] sm:$0xff]
        %v295 = vld [vmem:[%s170 + $0x308] sm:$0xff]
        %v296 = vld [vmem:[%s170 + $0x310] sm:$0xff]
        %v297 = vld [vmem:[%s170 + $0x318] sm:$0xff]
        %v298 = vld [vmem:[%s170 + $0x320] sm:$0xff]
        %v299 = vld [vmem:[%s170 + $0x328] sm:$0xff]
        %v300 = vld [vmem:[%s170 + $0x330] sm:$0xff]
        %v301 = vld [vmem:[%s170 + $0x338] sm:$0xff]
        %v302 = vld [vmem:[%s170 + $0x340] sm:$0xff]
        %v303 = vld [vmem:[%s170 + $0x348] sm:$0xff]
        %v304 = vld [vmem:[%s170 + $0x350] sm:$0xff]
        %v305 = vld [vmem:[%s170 + $0x358] sm:$0xff]
        %v306 = vld [vmem:[%s170 + $0x360] sm:$0xff]
        %v307 = vld [vmem:[%s170 + $0x368] sm:$0xff]
        %v308 = vld [vmem:[%s170 + $0x370] sm:$0xff]
        %v309 = vld [vmem:[%s170 + $0x378] sm:$0xff]
        %v310 = vld [vmem:[%s170 + $0x380] sm:$0xff]
        %v311 = vld [vmem:[%s170 + $0x388] sm:$0xff]
        %v312 = vld [vmem:[%s170 + $0x390] sm:$0xff]
        %v313 = vld [vmem:[%s170 + $0x398] sm:$0xff]
        %v314 = vld [vmem:[%s170 + $0x3a0] sm:$0xff]
        %v315 = vld [vmem:[%s170 + $0x3a8] sm:$0xff]
        %v316 = vld [vmem:[%s170 + $0x3b0] sm:$0xff]
        %v317 = vld [vmem:[%s170 + $0x3b8] sm:$0xff]
        %v318 = vld [vmem:[%s170 + $0x3c0] sm:$0xff]
        %v319 = vld [vmem:[%s170 + $0x3c8] sm:$0xff]
        %v320 = vld [vmem:[%s170 + $0x3d0] sm:$0xff]
        %v321 = vld [vmem:[%s170 + $0x3d8] sm:$0xff]
        %v322 = vld [vmem:[%s170 + $0x3e0] sm:$0xff]
        %v323 = vld [vmem:[%s170 + $0x3e8] sm:$0xff]
        %v324 = vld [vmem:[%s170 + $0x3f0] sm:$0xff]
        %v325 = vld [vmem:[%s170 + $0x3f8] sm:$0xff]
        %v326 = vld [vmem:[%s170 + $0x400] sm:$0xff]
        %v327 = vld [vmem:[%s170 + $0x408] sm:$0xff]
        %v328 = vld [vmem:[%s170 + $0x410] sm:$0xff]
        %v329 = vld [vmem:[%s170 + $0x418] sm:$0xff]
        %v330 = vld [vmem:[%s170 + $0x420] sm:$0xff]
        %v331 = vld [vmem:[%s170 + $0x428] sm:$0xff]
        %v332 = vld [vmem:[%s170 + $0x430] sm:$0xff]
        %v333 = vld [vmem:[%s170 + $0x438] sm:$0xff]
        %v334 = vld [vmem:[%s170 + $0x440] sm:$0xff]
        %v335 = vld [vmem:[%s170 + $0x448] sm:$0xff]
        %v336 = vld [vmem:[%s170 + $0x450] sm:$0xff]
        %v337 = vld [vmem:[%s170 + $0x458] sm:$0xff]
        %v338 = vld [vmem:[%s170 + $0x460] sm:$0xff]
        %v339 = vld [vmem:[%s170 + $0x468] sm:$0xff]
        %v340 = vld [vmem:[%s170 + $0x470] sm:$0xff]
        %v341 = vld [vmem:[%s170 + $0x478] sm:$0xff]
        %v342 = vld [vmem:[%s170 + $0x480] sm:$0xff]
        %v343 = vld [vmem:[%s170 + $0x488] sm:$0xff]
        %v344 = vld [vmem:[%s170 + $0x490] sm:$0xff]
        %v345 = vld [vmem:[%s170 + $0x498] sm:$0xff]
        %v346 = vld [vmem:[%s170 + $0x4a0] sm:$0xff]
        %v347 = vld [vmem:[%s170 + $0x4a8] sm:$0xff]
        %v348 = vld [vmem:[%s170 + $0x4b0] sm:$0xff]
        %v349 = vld [vmem:[%s170 + $0x4b8] sm:$0xff]
        %v350 = vld [vmem:[%s170 + $0x4c0] sm:$0xff]
        %v351 = vld [vmem:[%s170 + $0x4c8] sm:$0xff]
        %v352 = vld [vmem:[%s170 + $0x4d0] sm:$0xff]
        %v353 = vld [vmem:[%s170 + $0x4d8] sm:$0xff]
        %v354 = vld [vmem:[%s170 + $0x4e0] sm:$0xff]
        %v355 = vld [vmem:[%s170 + $0x4e8] sm:$0xff]
        %v356 = vld [vmem:[%s170 + $0x4f0] sm:$0xff]
        %v357 = vld [vmem:[%s170 + $0x4f8] sm:$0xff]
        %v358 = vld [vmem:[%s170 + $0x500] sm:$0xff]
        %v359 = vld [vmem:[%s170 + $0x508] sm:$0xff]
        %v360 = vld [vmem:[%s170 + $0x510] sm:$0xff]
        %v361 = vld [vmem:[%s170 + $0x518] sm:$0xff]
        %v362 = vld [vmem:[%s170 + $0x520] sm:$0xff]
        %v363 = vld [vmem:[%s170 + $0x528] sm:$0xff]
        %v364 = vld [vmem:[%s170 + $0x530] sm:$0xff]
        %v365 = vld [vmem:[%s170 + $0x538] sm:$0xff]
        %v366 = vld [vmem:[%s170 + $0x540] sm:$0xff]
        %v367 = vld [vmem:[%s170 + $0x548] sm:$0xff]
        %v368 = vld [vmem:[%s170 + $0x550] sm:$0xff]
        %v369 = vld [vmem:[%s170 + $0x558] sm:$0xff]
        %v370 = vld [vmem:[%s170 + $0x560] sm:$0xff]
        %v371 = vld [vmem:[%s170 + $0x568] sm:$0xff]
        %v372 = vld [vmem:[%s170 + $0x570] sm:$0xff]
        %v373 = vld [vmem:[%s170 + $0x578] sm:$0xff]
        %v374 = vld [vmem:[%s170 + $0x580] sm:$0xff]
        %v375 = vld [vmem:[%s170 + $0x588] sm:$0xff]
        %v376 = vld [vmem:[%s170 + $0x590] sm:$0xff]
        %v377 = vld [vmem:[%s170 + $0x598] sm:$0xff]
        %v378 = vld [vmem:[%s170 + $0x5a0] sm:$0xff]
        %v379 = vld [vmem:[%s170 + $0x5a8] sm:$0xff]
        %v380 = vld [vmem:[%s170 + $0x5b0] sm:$0xff]
        %v381 = vld [vmem:[%s170 + $0x5b8] sm:$0xff]
        %v382 = vld [vmem:[%s170 + $0x5c0] sm:$0xff]
        %v383 = vld [vmem:[%s170 + $0x5c8] sm:$0xff]
        %v384 = vld [vmem:[%s170 + $0x5d0] sm:$0xff]
        %v385 = vld [vmem:[%s170 + $0x5d8] sm:$0xff]
        %v386 = vld [vmem:[%s170 + $0x5e0] sm:$0xff]
        %v387 = vld [vmem:[%s170 + $0x5e8] sm:$0xff]
        %v388 = vld [vmem:[%s170 + $0x5f0] sm:$0xff]
        %v389 = vld [vmem:[%s170 + $0x5f8] sm:$0xff]
        %v390 = vld [vmem:[%s170 + $0x600] sm:$0xff]
        %v391 = vld [vmem:[%s170 + $0x608] sm:$0xff]
        %v392 = vld [vmem:[%s170 + $0x610] sm:$0xff]
        %v393 = vld [vmem:[%s170 + $0x618] sm:$0xff]
        %v394 = vld [vmem:[%s170 + $0x620] sm:$0xff]
        %v395 = vld [vmem:[%s170 + $0x628] sm:$0xff]
        %v396 = vld [vmem:[%s170 + $0x630] sm:$0xff]
        %v397 = vld [vmem:[%s170 + $0x638] sm:$0xff]
        %v398 = vld [vmem:[%s170 + $0x640] sm:$0xff]
        %v399 = vld [vmem:[%s170 + $0x648] sm:$0xff]
        %v400 = vld [vmem:[%s170 + $0x650] sm:$0xff]
        %v401 = vld [vmem:[%s170 + $0x658] sm:$0xff]
        %v402 = vld [vmem:[%s170 + $0x660] sm:$0xff]
        %v403 = vld [vmem:[%s170 + $0x668] sm:$0xff]
        %v404 = vld [vmem:[%s170 + $0x670] sm:$0xff]
        %v405 = vld [vmem:[%s170 + $0x678] sm:$0xff]
        %v406 = vld [vmem:[%s170 + $0x680] sm:$0xff]
        %v407 = vld [vmem:[%s170 + $0x688] sm:$0xff]
        %v408 = vld [vmem:[%s170 + $0x690] sm:$0xff]
        %v409 = vld [vmem:[%s170 + $0x698] sm:$0xff]
        %v410 = vld [vmem:[%s170 + $0x6a0] sm:$0xff]
        %v411 = vld [vmem:[%s170 + $0x6a8] sm:$0xff]
        %v412 = vld [vmem:[%s170 + $0x6b0] sm:$0xff]
        %v413 = vld [vmem:[%s170 + $0x6b8] sm:$0xff]
        %v414 = vld [vmem:[%s170 + $0x6c0] sm:$0xff]
        %v415 = vld [vmem:[%s170 + $0x6c8] sm:$0xff]
        %v416 = vld [vmem:[%s170 + $0x6d0] sm:$0xff]
        %v417 = vld [vmem:[%s170 + $0x6d8] sm:$0xff]
        %v418 = vld [vmem:[%s170 + $0x6e0] sm:$0xff]
        %v419 = vld [vmem:[%s170 + $0x6e8] sm:$0xff]
        %v420 = vld [vmem:[%s170 + $0x6f0] sm:$0xff]
        %v421 = vld [vmem:[%s170 + $0x6f8] sm:$0xff]
        %v422 = vld [vmem:[%s170 + $0x700] sm:$0xff]
        %v423 = vld [vmem:[%s170 + $0x708] sm:$0xff]
        %v424 = vld [vmem:[%s170 + $0x710] sm:$0xff]
        %v425 = vld [vmem:[%s170 + $0x718] sm:$0xff]
        %v426 = vld [vmem:[%s170 + $0x720] sm:$0xff]
        %v427 = vld [vmem:[%s170 + $0x728] sm:$0xff]
        %v428 = vld [vmem:[%s170 + $0x730] sm:$0xff]
        %v429 = vld [vmem:[%s170 + $0x738] sm:$0xff]
        %v430 = vld [vmem:[%s170 + $0x740] sm:$0xff]
        %v431 = vld [vmem:[%s170 + $0x748] sm:$0xff]
        %v432 = vld [vmem:[%s170 + $0x750] sm:$0xff]
        %v433 = vld [vmem:[%s170 + $0x758] sm:$0xff]
        %v434 = vld [vmem:[%s170 + $0x760] sm:$0xff]
        %v435 = vld [vmem:[%s170 + $0x768] sm:$0xff]
        %v436 = vld [vmem:[%s170 + $0x770] sm:$0xff]
        %v437 = vld [vmem:[%s170 + $0x778] sm:$0xff]
        %v438 = vld [vmem:[%s170 + $0x780] sm:$0xff]
        %v439 = vld [vmem:[%s170 + $0x788] sm:$0xff]
        %v440 = vld [vmem:[%s170 + $0x790] sm:$0xff]
        %v441 = vld [vmem:[%s170 + $0x798] sm:$0xff]
        %v442 = vld [vmem:[%s170 + $0x7a0] sm:$0xff]
        %v443 = vld [vmem:[%s170 + $0x7a8] sm:$0xff]
        %v444 = vld [vmem:[%s170 + $0x7b0] sm:$0xff]
        %v445 = vld [vmem:[%s170 + $0x7b8] sm:$0xff]
        %v446 = vld [vmem:[%s170 + $0x7c0] sm:$0xff]
        %v447 = vld [vmem:[%s170 + $0x7c8] sm:$0xff]
        %v448 = vld [vmem:[%s170 + $0x7d0] sm:$0xff]
        %v449 = vld [vmem:[%s170 + $0x7d8] sm:$0xff]
        %v450 = vld [vmem:[%s170 + $0x7e0] sm:$0xff]
        %v451 = vld [vmem:[%s170 + $0x7e8] sm:$0xff]
        %v452 = vld [vmem:[%s170 + $0x7f0] sm:$0xff]
        %v453 = vld [vmem:[%s170 + $0x7f8] sm:$0xff]
        %s454 = sld [smem:[#allocation3]]
        %v455 = vstv %s454
        %v457 = vlaneseq
        %v458 = vshrl.u32 %v457, 7
        %v459 = vsub.s32 0, %v458
        %v460 = vrot.slane %v197, %v459
        %v461 = vlaneseq
        %v462 = vshrl.u32 %v461, 7
        %v463 = vsub.s32 1, %v462
        %v464 = vrot.slane %v197, %v463
        %v465 = vlaneseq
        %v466 = vshrl.u32 %v465, 7
        %v467 = vsub.s32 2, %v466
        %v468 = vrot.slane %v197, %v467
        %v469 = vlaneseq
        %v470 = vshrl.u32 %v469, 7
        %v471 = vsub.s32 3, %v470
        %v472 = vrot.slane %v197, %v471
        %v473 = vlaneseq
        %v474 = vshrl.u32 %v473, 7
        %v475 = vsub.s32 4, %v474
        %v476 = vrot.slane %v197, %v475
        %v477 = vlaneseq
        %v478 = vshrl.u32 %v477, 7
        %v479 = vsub.s32 5, %v478
        %v480 = vrot.slane %v197, %v479
        %v481 = vlaneseq
        %v482 = vshrl.u32 %v481, 7
        %v483 = vsub.s32 6, %v482
        %v484 = vrot.slane %v197, %v483
        %v485 = vlaneseq
        %v486 = vshrl.u32 %v485, 7
        %v487 = vsub.s32 7, %v486
        %v488 = vrot.slane %v197, %v487
        %497 = vmatprep.subr.mxu0 %v199
        %498 = vmatpush1.msra.mxu0 %v198
        %499 = vmatprep.subr.mxu0 %v201
        %500 = vmatpush1.msra.mxu0 %v200
        %501 = vmatprep.subr.mxu0 %v203
        %502 = vmatpush1.msra.mxu0 %v202
        %503 = vmatprep.subr.mxu0 %v205
        %504 = vmatpush1.msra.mxu0 %v204
        %505 = vmatprep.subr.mxu0 %v207
        %506 = vmatpush1.msra.mxu0 %v206
        %507 = vmatprep.subr.mxu0 %v209
        %508 = vmatpush1.msra.mxu0 %v208
        %509 = vmatprep.subr.mxu0 %v211
        %510 = vmatpush1.msra.mxu0 %v210
        %511 = vmatprep.subr.mxu0 %v213
        %512 = vmatpush1.msra.mxu0 %v212
        %513 = vmatprep.subr.mxu0 %v215
        %514 = vmatpush1.msra.mxu0 %v214
        %515 = vmatprep.subr.mxu0 %v217
        %516 = vmatpush1.msra.mxu0 %v216
        %517 = vmatprep.subr.mxu0 %v219
        %518 = vmatpush1.msra.mxu0 %v218
        %519 = vmatprep.subr.mxu0 %v221
        %520 = vmatpush1.msra.mxu0 %v220
        %521 = vmatprep.subr.mxu0 %v223
        %522 = vmatpush1.msra.mxu0 %v222
        %523 = vmatprep.subr.mxu0 %v225
        %524 = vmatpush1.msra.mxu0 %v224
        %525 = vmatprep.subr.mxu0 %v227
        %526 = vmatpush1.msra.mxu0 %v226
        %527 = vmatprep.subr.mxu0 %v229
        %528 = vmatpush1.msra.mxu0 %v228
        %529 = vmatprep.subr.mxu0 %v231
        %530 = vmatpush1.msra.mxu0 %v230
        %531 = vmatprep.subr.mxu0 %v233
        %532 = vmatpush1.msra.mxu0 %v232
        %533 = vmatprep.subr.mxu0 %v235
        %534 = vmatpush1.msra.mxu0 %v234
        %535 = vmatprep.subr.mxu0 %v237
        %536 = vmatpush1.msra.mxu0 %v236
        %537 = vmatprep.subr.mxu0 %v239
        %538 = vmatpush1.msra.mxu0 %v238
        %539 = vmatprep.subr.mxu0 %v241
        %540 = vmatpush1.msra.mxu0 %v240
        %541 = vmatprep.subr.mxu0 %v243
        %542 = vmatpush1.msra.mxu0 %v242
        %543 = vmatprep.subr.mxu0 %v245
        %544 = vmatpush1.msra.mxu0 %v244
        %545 = vmatprep.subr.mxu0 %v247
        %546 = vmatpush1.msra.mxu0 %v246
        %547 = vmatprep.subr.mxu0 %v249
        %548 = vmatpush1.msra.mxu0 %v248
        %549 = vmatprep.subr.mxu0 %v251
        %550 = vmatpush1.msra.mxu0 %v250
        %551 = vmatprep.subr.mxu0 %v253
        %552 = vmatpush1.msra.mxu0 %v252
        %553 = vmatprep.subr.mxu0 %v255
        %554 = vmatpush1.msra.mxu0 %v254
        %555 = vmatprep.subr.mxu0 %v257
        %556 = vmatpush1.msra.mxu0 %v256
        %557 = vmatprep.subr.mxu0 %v259
        %558 = vmatpush1.msra.mxu0 %v258
        %559 = vmatprep.subr.mxu0 %v261
        %560 = vmatpush1.msra.mxu0 %v260
        %561 = vmatprep.mubr.f32.mxu0 %v464
        %562 = vmatmul.mubr.f32.gmra.mrb[0].mxu0 %v460
        %v563 = vpop.f32.mrb[0].mxu0
        %v564 = vadd.f32 %v455, %v563
        %v565 = vpop.f32.mrb[0].mxu0
        %v566 = vadd.f32 %v455, %v565
        %567 = vdwg.mxu0
        %568 = vmatprep.subr.mxu0 %v263
        %569 = vmatpush1.msra.mxu0 %v262
        %570 = vmatprep.subr.mxu0 %v265
        %571 = vmatpush1.msra.mxu0 %v264
        %572 = vmatprep.subr.mxu0 %v267
        %573 = vmatpush1.msra.mxu0 %v266
        %574 = vmatprep.subr.mxu0 %v269
        %575 = vmatpush1.msra.mxu0 %v268
        %576 = vmatprep.subr.mxu0 %v271
        %577 = vmatpush1.msra.mxu0 %v270
        %578 = vmatprep.subr.mxu0 %v273
        %579 = vmatpush1.msra.mxu0 %v272
        %580 = vmatprep.subr.mxu0 %v275
        %581 = vmatpush1.msra.mxu0 %v274
        %582 = vmatprep.subr.mxu0 %v277
        %583 = vmatpush1.msra.mxu0 %v276
        %584 = vmatprep.subr.mxu0 %v279
        %585 = vmatpush1.msra.mxu0 %v278
        %586 = vmatprep.subr.mxu0 %v281
        %587 = vmatpush1.msra.mxu0 %v280
        %588 = vmatprep.subr.mxu0 %v283
        %589 = vmatpush1.msra.mxu0 %v282
        %590 = vmatprep.subr.mxu0 %v285
        %591 = vmatpush1.msra.mxu0 %v284
        %592 = vmatprep.subr.mxu0 %v287
        %593 = vmatpush1.msra.mxu0 %v286
        %594 = vmatprep.subr.mxu0 %v289
        %595 = vmatpush1.msra.mxu0 %v288
        %596 = vmatprep.subr.mxu0 %v291
        %597 = vmatpush1.msra.mxu0 %v290
        %598 = vmatprep.subr.mxu0 %v293
        %599 = vmatpush1.msra.mxu0 %v292
        %600 = vmatprep.subr.mxu0 %v295
        %601 = vmatpush1.msra.mxu0 %v294
        %602 = vmatprep.subr.mxu0 %v297
        %603 = vmatpush1.msra.mxu0 %v296
        %604 = vmatprep.subr.mxu0 %v299
        %605 = vmatpush1.msra.mxu0 %v298
        %606 = vmatprep.subr.mxu0 %v301
        %607 = vmatpush1.msra.mxu0 %v300
        %608 = vmatprep.subr.mxu0 %v303
        %609 = vmatpush1.msra.mxu0 %v302
        %610 = vmatprep.subr.mxu0 %v305
        %611 = vmatpush1.msra.mxu0 %v304
        %612 = vmatprep.subr.mxu0 %v307
        %613 = vmatpush1.msra.mxu0 %v306
        %614 = vmatprep.subr.mxu0 %v309
        %615 = vmatpush1.msra.mxu0 %v308
        %616 = vmatprep.subr.mxu0 %v311
        %617 = vmatpush1.msra.mxu0 %v310
        %618 = vmatprep.subr.mxu0 %v313
        %619 = vmatpush1.msra.mxu0 %v312
        %620 = vmatprep.subr.mxu0 %v315
        %621 = vmatpush1.msra.mxu0 %v314
        %622 = vmatprep.subr.mxu0 %v317
        %623 = vmatpush1.msra.mxu0 %v316
        %624 = vmatprep.subr.mxu0 %v319
        %625 = vmatpush1.msra.mxu0 %v318
        %626 = vmatprep.subr.mxu0 %v321
        %627 = vmatpush1.msra.mxu0 %v320
        %628 = vmatprep.subr.mxu0 %v323
        %629 = vmatpush1.msra.mxu0 %v322
        %630 = vmatprep.subr.mxu0 %v325
        %631 = vmatpush1.msra.mxu0 %v324
        %632 = vmatprep.mubr.f32.mxu0 %v472
        %633 = vmatmul.mubr.f32.gmra.mrb[0].mxu0 %v468
        %v634 = vpop.f32.mrb[0].mxu0
        %v635 = vadd.f32 %v564, %v634
        %v636 = vpop.f32.mrb[0].mxu0
        %v637 = vadd.f32 %v566, %v636
        %638 = vdwg.mxu0
        %639 = vmatprep.subr.mxu0 %v327
        %640 = vmatpush1.msra.mxu0 %v326
        %641 = vmatprep.subr.mxu0 %v329
        %642 = vmatpush1.msra.mxu0 %v328
        %643 = vmatprep.subr.mxu0 %v331
        %644 = vmatpush1.msra.mxu0 %v330
        %645 = vmatprep.subr.mxu0 %v333
        %646 = vmatpush1.msra.mxu0 %v332
        %647 = vmatprep.subr.mxu0 %v335
        %648 = vmatpush1.msra.mxu0 %v334
        %649 = vmatprep.subr.mxu0 %v337
        %650 = vmatpush1.msra.mxu0 %v336
        %651 = vmatprep.subr.mxu0 %v339
        %652 = vmatpush1.msra.mxu0 %v338
        %653 = vmatprep.subr.mxu0 %v341
        %654 = vmatpush1.msra.mxu0 %v340
        %655 = vmatprep.subr.mxu0 %v343
        %656 = vmatpush1.msra.mxu0 %v342
        %657 = vmatprep.subr.mxu0 %v345
        %658 = vmatpush1.msra.mxu0 %v344
        %659 = vmatprep.subr.mxu0 %v347
        %660 = vmatpush1.msra.mxu0 %v346
        %661 = vmatprep.subr.mxu0 %v349
        %662 = vmatpush1.msra.mxu0 %v348
        %663 = vmatprep.subr.mxu0 %v351
        %664 = vmatpush1.msra.mxu0 %v350
        %665 = vmatprep.subr.mxu0 %v353
        %666 = vmatpush1.msra.mxu0 %v352
        %667 = vmatprep.subr.mxu0 %v355
        %668 = vmatpush1.msra.mxu0 %v354
        %669 = vmatprep.subr.mxu0 %v357
        %670 = vmatpush1.msra.mxu0 %v356
        %671 = vmatprep.subr.mxu0 %v359
        %672 = vmatpush1.msra.mxu0 %v358
        %673 = vmatprep.subr.mxu0 %v361
        %674 = vmatpush1.msra.mxu0 %v360
        %675 = vmatprep.subr.mxu0 %v363
        %676 = vmatpush1.msra.mxu0 %v362
        %677 = vmatprep.subr.mxu0 %v365
        %678 = vmatpush1.msra.mxu0 %v364
        %679 = vmatprep.subr.mxu0 %v367
        %680 = vmatpush1.msra.mxu0 %v366
        %681 = vmatprep.subr.mxu0 %v369
        %682 = vmatpush1.msra.mxu0 %v368
        %683 = vmatprep.subr.mxu0 %v371
        %684 = vmatpush1.msra.mxu0 %v370
        %685 = vmatprep.subr.mxu0 %v373
        %686 = vmatpush1.msra.mxu0 %v372
        %687 = vmatprep.subr.mxu0 %v375
        %688 = vmatpush1.msra.mxu0 %v374
        %689 = vmatprep.subr.mxu0 %v377
        %690 = vmatpush1.msra.mxu0 %v376
        %691 = vmatprep.subr.mxu0 %v379
        %692 = vmatpush1.msra.mxu0 %v378
        %693 = vmatprep.subr.mxu0 %v381
        %694 = vmatpush1.msra.mxu0 %v380
        %695 = vmatprep.subr.mxu0 %v383
        %696 = vmatpush1.msra.mxu0 %v382
        %697 = vmatprep.subr.mxu0 %v385
        %698 = vmatpush1.msra.mxu0 %v384
        %699 = vmatprep.subr.mxu0 %v387
        %700 = vmatpush1.msra.mxu0 %v386
        %701 = vmatprep.subr.mxu0 %v389
        %702 = vmatpush1.msra.mxu0 %v388
        %703 = vmatprep.mubr.f32.mxu0 %v480
        %704 = vmatmul.mubr.f32.gmra.mrb[0].mxu0 %v476
        %v705 = vpop.f32.mrb[0].mxu0
        %v706 = vadd.f32 %v635, %v705
        %v707 = vpop.f32.mrb[0].mxu0
        %v708 = vadd.f32 %v637, %v707
        %709 = vdwg.mxu0
        %710 = vmatprep.subr.mxu0 %v391
        %711 = vmatpush1.msra.mxu0 %v390
        %712 = vmatprep.subr.mxu0 %v393
        %713 = vmatpush1.msra.mxu0 %v392
        %714 = vmatprep.subr.mxu0 %v395
        %715 = vmatpush1.msra.mxu0 %v394
        %716 = vmatprep.subr.mxu0 %v397
        %717 = vmatpush1.msra.mxu0 %v396
        %718 = vmatprep.subr.mxu0 %v399
        %719 = vmatpush1.msra.mxu0 %v398
        %720 = vmatprep.subr.mxu0 %v401
        %721 = vmatpush1.msra.mxu0 %v400
        %722 = vmatprep.subr.mxu0 %v403
        %723 = vmatpush1.msra.mxu0 %v402
        %724 = vmatprep.subr.mxu0 %v405
        %725 = vmatpush1.msra.mxu0 %v404
        %726 = vmatprep.subr.mxu0 %v407
        %727 = vmatpush1.msra.mxu0 %v406
        %728 = vmatprep.subr.mxu0 %v409
        %729 = vmatpush1.msra.mxu0 %v408
        %730 = vmatprep.subr.mxu0 %v411
        %731 = vmatpush1.msra.mxu0 %v410
        %732 = vmatprep.subr.mxu0 %v413
        %733 = vmatpush1.msra.mxu0 %v412
        %734 = vmatprep.subr.mxu0 %v415
        %735 = vmatpush1.msra.mxu0 %v414
        %736 = vmatprep.subr.mxu0 %v417
        %737 = vmatpush1.msra.mxu0 %v416
        %738 = vmatprep.subr.mxu0 %v419
        %739 = vmatpush1.msra.mxu0 %v418
        %740 = vmatprep.subr.mxu0 %v421
        %741 = vmatpush1.msra.mxu0 %v420
        %742 = vmatprep.subr.mxu0 %v423
        %743 = vmatpush1.msra.mxu0 %v422
        %744 = vmatprep.subr.mxu0 %v425
        %745 = vmatpush1.msra.mxu0 %v424
        %746 = vmatprep.subr.mxu0 %v427
        %747 = vmatpush1.msra.mxu0 %v426
        %748 = vmatprep.subr.mxu0 %v429
        %749 = vmatpush1.msra.mxu0 %v428
        %750 = vmatprep.subr.mxu0 %v431
        %751 = vmatpush1.msra.mxu0 %v430
        %752 = vmatprep.subr.mxu0 %v433
        %753 = vmatpush1.msra.mxu0 %v432
        %754 = vmatprep.subr.mxu0 %v435
        %755 = vmatpush1.msra.mxu0 %v434
        %756 = vmatprep.subr.mxu0 %v437
        %757 = vmatpush1.msra.mxu0 %v436
        %758 = vmatprep.subr.mxu0 %v439
        %759 = vmatpush1.msra.mxu0 %v438
        %760 = vmatprep.subr.mxu0 %v441
        %761 = vmatpush1.msra.mxu0 %v440
        %762 = vmatprep.subr.mxu0 %v443
        %763 = vmatpush1.msra.mxu0 %v442
        %764 = vmatprep.subr.mxu0 %v445
        %765 = vmatpush1.msra.mxu0 %v444
        %766 = vmatprep.subr.mxu0 %v447
        %767 = vmatpush1.msra.mxu0 %v446
        %768 = vmatprep.subr.mxu0 %v449
        %769 = vmatpush1.msra.mxu0 %v448
        %770 = vmatprep.subr.mxu0 %v451
        %771 = vmatpush1.msra.mxu0 %v450
        %772 = vmatprep.subr.mxu0 %v453
        %773 = vmatpush1.msra.mxu0 %v452
        %774 = vmatprep.mubr.f32.mxu0 %v488
        %775 = vmatmul.mubr.f32.gmra.mrb[0].mxu0 %v484
        %v776 = vpop.f32.mrb[0].mxu0
        %v777 = vadd.f32 %v706, %v776
        %v778 = vpop.f32.mrb[0].mxu0
        %v779 = vadd.f32 %v708, %v778
        %780 = vdwg.mxu0
        %v783 = vcombine.low %v777, %v779
        %v785 = vunpack.c.l.s4 1966171168
        %v786 = vunpack.c.0.s8 %v785
        %v787 = vlaneseq
        %v788 = vshrl.u32 %v787, 7
        %v789 = vsub.s32 %v786, %v788
        %v790 = vrot.slane %v783, %v789
        %v792 = vunpack.c.l.s4 1966171168
        %v793 = vunpack.c.0.s8 %v792
        %v794 = vlaneseq
        %v795 = vshrl.u32 %v794, 7
        %v796 = vsub.s32 %v793, %v795
        %v797 = vrot.slane %v790, %v796
        %v799 = vlaneseq
        %vm800 = vcmp.ge.s32.totalorder %v799, 0
        %vm801 = vcmp.lt.s32.totalorder %v799, 256
        %vm802 = vmand %vm800, %vm801
        %803 = vst.msk [vmem:[%s194] sm:$0x3] %vm802, %v797
        %s804 = sand.u32 %s93, 1
        %s805 = scalar_lea.sflag [#allocation6], %s804
        %s806 = sand.u32 %s93, 1
        %s807 = smul.addr %s806, 2
        %s808 = scalar_lea.vmem [#allocation9], %s807
        // Predicated region
        $region37: #{tpu_custom_call.1} parent=27 // pred_check
          %p809 = pneg %p103
        $region38: #{tpu_custom_call.1} parent=27 // pred_check_branch
          %811 = sbr.rel (%p809) target = $region40
        $region39: #{tpu_custom_call.1} parent=27 // pred_region
          %s812 = smul.u32 2, %s27
          %s814 = ssub.s32 32, 32
          %815 = vsyncadd %s805, %s814
          %s816 = smul.addr %s26, 2
          %s817 = sadd.s32 %s812, %s816
          %s818 = smul.addr %s817, 16
          %s819 = scalar_lea.hbm %s3, %s818
          %s821 = sshll.u32 %s808, 4
          %s822 = int_to_ptr.vmem [resolvable:$true] %s821
          %824 = dma.vmem_to_hbm [thread:$0]  %s822, 32, %s819, %s805
        $region40: #{tpu_custom_call.1} parent=27 // pred_fallthru
          _
      $region28: #{tpu_custom_call.1} parent=5 // pred_fallthru
        _
      %p825 = scmp.le.s32.totalorder 2, %s17
      // Predicated region
      $region41: #{tpu_custom_call.1} parent=5 // pred_check
        %p826 = pneg %p825
      $region42: #{tpu_custom_call.1} parent=5 // pred_check_branch
        %828 = sbr.rel (%p826) target = $region44
      $region43: #{tpu_custom_call.1} parent=5 // pred_region
        %s829 = ssub.s32 %s17, 2
        // Predicated region
        $region45: #{tpu_custom_call.1} parent=43 // pred_check
          %p830 = pneg %p109
        $region46: #{tpu_custom_call.1} parent=43 // pred_check_branch
          %832 = sbr.rel (%p830) target = $region48
        $region47: #{tpu_custom_call.1} parent=43 // pred_region
          %s833 = sand.u32 %s94, 1
          %s834 = scalar_lea.sflag [#allocation6], %s833
          %s835 = sand.u32 %s94, 1
          %s836 = smul.addr %s835, 2
          %s837 = scalar_lea.vmem [#allocation9], %s836
          %838 = dma.done %s834, 32
        $region48: #{tpu_custom_call.1} parent=43 // pred_fallthru
          _
      $region44: #{tpu_custom_call.1} parent=5 // pred_fallthru
        _
    $region6: #{tpu_custom_call.1} parent=1 // loop_footer
      %s21 = sadd.s32 1, %s17
    $region7: #{tpu_custom_call.1} parent=1 // loop_footer_branch
      %16 = sbr.rel target = $region3
    $region8: #{tpu_custom_call.1} parent=1 // loop_exit
      _
    %839 = vsyncpa [#allocation5], 1
    %s840 = scalar_lea.sflag [#allocation5], 1
    %841 = vsyncpa %s840, 1
    %842 = vsyncpa [#allocation8], 1
    %843 = vsyncpa [#allocation6], 1
    %s844 = scalar_lea.sflag [#allocation6], 1
    %845 = vsyncpa %s844, 1

</llo_original>
